<compile_context>
chip_gen: v7x
topology: tpu7x:2x2x1
jax: 0.10.0
libtpu: 0.0.40
codegen_flags: <defaults>
</compile_context>

<pallas_src>
import functools

import jax
import jax.numpy as jnp
import numpy as np
from jax import lax
from jax.experimental import pallas as pl
from jax.experimental.pallas import tpu as pltpu


def _round_up(x, m):
    return ((x + m - 1) // m) * m


def _cb_loss_kernel(logit_ref, target_ref, out_ref, *, w0, w1, n_steps,
                    tile_rows, full_rows, rem):
    i = pl.program_id(0)   # core axis ("parallel")
    j = pl.program_id(1)   # reduction axis ("arbitrary")

    # Output block (per-core partial-sum vreg) is resident across the j axis ->
    # use it directly as the accumulator.
    @pl.when(j == 0)
    def _():
        out_ref[...] = jnp.zeros_like(out_ref)

    # Stream inputs in their native dtype; upcast on the VPU (free: HBM-bound).
    x = logit_ref[...].astype(jnp.float32)
    t = target_ref[...].astype(jnp.float32)

    # Stable BCE-with-logits: one exp + one log1p per element.
    L = jnp.log1p(jnp.exp(-jnp.abs(x)))
    log_p = -(jnp.maximum(-x, 0.0) + L)       # log(sigmoid(x))
    log_1mp = -(jnp.maximum(x, 0.0) + L)      # log(1 - sigmoid(x))
    val = w0 * t * log_p + w1 * (1.0 - t) * log_1mp

    # In-kernel tail mask (replaces wrapper padding): zero every element whose
    # global flat index >= true element count, BEFORE accumulation, so garbage
    # from the partial boundary block (or a clamped duplicate block) can never
    # reach the sum.  Pure VPU work, hidden under the HBM-bound pipeline.
    blk = i * n_steps + j                                   # logical block idx
    row = blk * tile_rows + lax.broadcasted_iota(jnp.int32, val.shape, 0)
    if rem == 0:
        mask = row < full_rows
    else:
        col = lax.broadcasted_iota(jnp.int32, val.shape, 1)
        mask = (row < full_rows) | ((row == full_rows) & (col < rem))
    val = jnp.where(mask, val, 0.0)

    # Fold the tile down to one (8, 128) vreg with pure VPU adds; the single
    # cross-lane reduction happens once, outside the kernel.
    out_ref[...] += jnp.sum(val.reshape(tile_rows // 8, 8, 128), axis=0)[None]


def _default_n_par():
    # Two TensorCores per chip only on v7x-class parts; one on v5e/v6e.
    try:
        kind = jax.devices()[0].device_kind.lower()
    except Exception:
        return 1
    return 2 if "7" in kind else 1


def cb_loss(logit, target, *, beta, num_per_class, tile_rows=4096, n_par=None):
    """Class-balanced BCE loss; logit/target may be any matching shape/dtype."""
    # --- weight setup (plain numpy glue, identical to the PyTorch module). ---
    # Only weights[0]/weights[1] are used (binary CB loss); extra entries in
    # num_per_class are ignored, matching the original module.
    effective_num = 1.0 - np.power(beta, np.asarray(num_per_class, np.float64))
    weights = (1.0 - beta) / np.asarray(effective_num)
    w0 = float(weights[0])
    w1 = float(weights[1])

    lanes = 128
    total = int(np.prod(logit.shape))
    full_rows, rem = divmod(total, lanes)

    if n_par is None:
        n_par = _default_n_par()

    # Sublane multiple required by the narrowest streamed dtype
    # (f32 -> 8, bf16/f16 -> 16, int8/bool -> 32).
    mult = 8
    for dt in (logit.dtype, target.dtype):
        mult = max(mult, 32 // max(jnp.dtype(dt).itemsize, 1))

    rows_needed = -(-total // lanes)
    if rem != 0 or rows_needed < mult:
        # Rare fallback (ragged numel or tiny input): one small jnp.pad copy so
        # the reshape to (rows, 128) is possible; pad values are irrelevant
        # because the in-kernel mask is keyed on `total`.
        # TODO(synk): a fully copy-free ragged path would need 1-D BlockSpecs or
        # a separate wrapper-side remainder term.
        rows2d = _round_up(max(rows_needed, mult), mult)
        pad = rows2d * lanes - total
        logit_flat = jnp.pad(logit.reshape(-1), (0, pad))
        target_flat = jnp.pad(target.reshape(-1), (0, pad))
    else:
        # Common case: zero extra HBM passes — reshape of a contiguous array is
        # free and inputs keep their native dtype (no wrapper upcast).
        rows2d = rows_needed
        logit_flat = logit.reshape(-1)
        target_flat = target.reshape(-1)

    logit2d = logit_flat.reshape(rows2d, lanes)
    target2d = target_flat.reshape(rows2d, lanes)

    # --- tiling: big blocks, never larger than the array, always a multiple of
    # the sublane requirement so the BlockSpec is valid for every input dtype.
    tile_cap = (rows2d // mult) * mult                  # >= mult by construction
    per_core = max(mult, _round_up(-(-rows2d // n_par), mult))
    tr = min(_round_up(int(tile_rows), mult), tile_cap, per_core)

    n_blocks = -(-rows2d // tr)
    n_steps = -(-n_blocks // n_par)

    kernel = functools.partial(_cb_loss_kernel, w0=w0, w1=w1, n_steps=n_steps,
                               tile_rows=tr, full_rows=full_rows, rem=rem)

    # Clamp so a surplus (core, step) pair never issues an out-of-bounds DMA;
    # its (duplicated) contribution is zeroed by the in-kernel mask.
    in_map = lambda i, j: (jnp.minimum(i * n_steps + j, n_blocks - 1), 0)

    partial = pl.pallas_call(
        kernel,
        out_shape=jax.ShapeDtypeStruct((n_par, 8, lanes), jnp.float32),
        grid_spec=pltpu.PrefetchScalarGridSpec(
            num_scalar_prefetch=0,
            grid=(n_par, n_steps),
            in_specs=[
                pl.BlockSpec((tr, lanes), in_map),
                pl.BlockSpec((tr, lanes), in_map),
            ],
            out_specs=pl.BlockSpec((1, 8, lanes), lambda i, j: (i, 0, 0)),
        ),
        compiler_params=pltpu.CompilerParams(
            dimension_semantics=("parallel", "arbitrary"),
        ),
    )(logit2d, target2d)

    # Final tiny cross-lane reduction + normalization (cheap, done in XLA).
    return -jnp.sum(partial) / total


def cb_loss_ref(logit, target, *, beta, num_per_class):
    effective_num = 1.0 - np.power(beta, np.asarray(num_per_class, np.float64))
    weights = (1.0 - beta) / np.asarray(effective_num)
    p = jax.nn.sigmoid(logit.astype(jnp.float32))
    t = target.astype(jnp.float32)
    cb = weights[0] * t * jnp.log(p) + weights[1] * (1 - t) * jnp.log(1 - p)
    return -jnp.mean(cb)


if __name__ == "__main__":
    key = jax.random.PRNGKey(0)
    k1, k2, k3, k4 = jax.random.split(key, 4)

    beta = 0.999
    num_per_class = [100.0, 30.0]

    # --- main test: small NCHW inputs (batch=2, channels=4, spatial=16x16),
    # numel % 128 == 0 -> zero-copy path. ---
    x = jax.random.normal(k1, (2, 4, 16, 16), dtype=jnp.float32)
    tgt = (jax.random.uniform(k2, (2, 4, 16, 16)) > 0.5).astype(jnp.float32)

    loss = cb_loss(x, tgt, beta=beta, num_per_class=num_per_class)
    loss = jax.block_until_ready(loss)
    ref = cb_loss_ref(x, tgt, beta=beta, num_per_class=num_per_class)
    np.testing.assert_allclose(np.asarray(loss), np.asarray(ref),
                               rtol=1e-5, atol=1e-5)

    # --- ragged-shape test: numel % 128 != 0 -> small-pad fallback + mask. ---
    x2 = jax.random.normal(k3, (2, 3, 7, 5), dtype=jnp.float32)
    tgt2 = (jax.random.uniform(k4, (2, 3, 7, 5)) > 0.5).astype(jnp.float32)

    loss2 = cb_loss(x2, tgt2, beta=beta, num_per_class=num_per_class)
    loss2 = jax.block_until_ready(loss2)
    ref2 = cb_loss_ref(x2, tgt2, beta=beta, num_per_class=num_per_class)
    np.testing.assert_allclose(np.asarray(loss2), np.asarray(ref2),
                               rtol=1e-5, atol=1e-5)

    # --- narrow-dtype test: bf16 logits + int8 targets streamed natively. ---
    x3 = x.astype(jnp.bfloat16)
    tgt3 = tgt.astype(jnp.int8)
    loss3 = cb_loss(x3, tgt3, beta=beta, num_per_class=num_per_class)
    loss3 = jax.block_until_ready(loss3)
    ref3 = cb_loss_ref(x3, tgt3, beta=beta, num_per_class=num_per_class)
    np.testing.assert_allclose(np.asarray(loss3), np.asarray(ref3),
                               rtol=1e-5, atol=1e-5)

    print("KERNEL_OK")
</pallas_src>

<mosaic_0001>
module attributes {stable_mosaic.version = 11 : i64} {
  func.func @_cb_loss_kernel(%arg0: i32, %arg1: i32, %arg2: memref<16x128xf32, #tpu.memory_space<vmem>>, %arg3: memref<16x128xf32, #tpu.memory_space<vmem>>, %arg4: memref<1x8x128xf32, #tpu.memory_space<vmem>>) attributes {dimension_semantics = [#tpu.dimension_semantics<parallel>, #tpu.dimension_semantics<arbitrary>], iteration_bounds = array<i64: 1, 1>, scalar_prefetch = 0 : i64, scratch_operands = 0 : i64, tpu.core_type = #tpu.core_type<tc>, window_params = [{transform_indices = @transform_0, window_bounds = array<i64: 16, 128>}, {transform_indices = @transform_1, window_bounds = array<i64: 16, 128>}, {transform_indices = @transform_2, window_bounds = array<i64: 1, 8, 128>}]} {
    %c0_i32 = arith.constant 0 : i32
    %0 = arith.cmpi eq, %arg1, %c0_i32 : i32
    %1 = arith.extui %0 : i1 to i32
    %c0_i32_0 = arith.constant 0 : i32
    %2 = arith.cmpi ne, %1, %c0_i32_0 : i32
    scf.if %2 {
      %cst_21 = arith.constant 0.000000e+00 : f32
      %47 = vector.broadcast %cst_21 : f32 to vector<1x8x128xf32>
      %c0_22 = arith.constant 0 : index
      %c0_23 = arith.constant 0 : index
      %c0_24 = arith.constant 0 : index
      %48 = vector.load %arg4[%c0_22, %c0_23, %c0_24] : memref<1x8x128xf32, #tpu.memory_space<vmem>>, vector<1x8x128xf32>
      tpu.vector_store %arg4[%c0_22, %c0_23, %c0_24], %47 {strides = array<i32>} : memref<1x8x128xf32, #tpu.memory_space<vmem>>, vector<1x8x128xf32>,
    } else {
    }
    %c0 = arith.constant 0 : index
    %c0_1 = arith.constant 0 : index
    %3 = vector.load %arg2[%c0, %c0_1] : memref<16x128xf32, #tpu.memory_space<vmem>>, vector<16x128xf32>
    %c0_2 = arith.constant 0 : index
    %c0_3 = arith.constant 0 : index
    %4 = vector.load %arg3[%c0_2, %c0_3] : memref<16x128xf32, #tpu.memory_space<vmem>>, vector<16x128xf32>
    %5 = math.absf %3 : vector<16x128xf32>
    %cst = arith.constant 0.000000e+00 : f32
    %6 = vector.broadcast %cst : f32 to vector<16x128xf32>
    %7 = arith.subf %6, %5 : vector<16x128xf32>
    %8 = math.exp %7 : vector<16x128xf32>
    %9 = math.log1p %8 : vector<16x128xf32>
    %cst_4 = arith.constant 0.000000e+00 : f32
    %10 = vector.broadcast %cst_4 : f32 to vector<16x128xf32>
    %11 = arith.subf %10, %3 : vector<16x128xf32>
    %cst_5 = arith.constant 0.000000e+00 : f32
    %12 = vector.broadcast %cst_5 : f32 to vector<16x128xf32>
    %13 = arith.maximumf %11, %12 : vector<16x128xf32>
    %14 = arith.addf %13, %9 : vector<16x128xf32>
    %cst_6 = arith.constant 0.000000e+00 : f32
    %15 = vector.broadcast %cst_6 : f32 to vector<16x128xf32>
    %16 = arith.subf %15, %14 : vector<16x128xf32>
    %cst_7 = arith.constant 0.000000e+00 : f32
    %17 = vector.broadcast %cst_7 : f32 to vector<16x128xf32>
    %18 = arith.maximumf %3, %17 : vector<16x128xf32>
    %19 = arith.addf %18, %9 : vector<16x128xf32>
    %cst_8 = arith.constant 0.000000e+00 : f32
    %20 = vector.broadcast %cst_8 : f32 to vector<16x128xf32>
    %21 = arith.subf %20, %19 : vector<16x128xf32>
    %cst_9 = arith.constant 0.0105033349 : f32
    %22 = vector.broadcast %cst_9 : f32 to vector<16x128xf32>
    %23 = arith.mulf %22, %4 : vector<16x128xf32>
    %24 = arith.mulf %23, %16 : vector<16x128xf32>
    %cst_10 = arith.constant 1.000000e+00 : f32
    %25 = vector.broadcast %cst_10 : f32 to vector<16x128xf32>
    %26 = arith.subf %25, %4 : vector<16x128xf32>
    %cst_11 = arith.constant 0.0338191651 : f32
    %27 = vector.broadcast %cst_11 : f32 to vector<16x128xf32>
    %28 = arith.mulf %27, %26 : vector<16x128xf32>
    %29 = arith.mulf %28, %21 : vector<16x128xf32>
    %30 = arith.addf %24, %29 : vector<16x128xf32>
    %c1_i32 = arith.constant 1 : i32
    %31 = arith.muli %arg0, %c1_i32 : i32
    %32 = arith.addi %31, %arg1 : i32
    %c16_i32 = arith.constant 16 : i32
    %33 = arith.muli %32, %c16_i32 : i32
    %34 = tpu.iota {dimensions = array<i32: 0>} : vector<16x128xi32>
    %35 = vector.broadcast %33 : i32 to vector<16x128xi32>
    %36 = arith.addi %35, %34 : vector<16x128xi32>
    %c16_i32_12 = arith.constant 16 : i32
    %37 = vector.broadcast %c16_i32_12 : i32 to vector<16x128xi32>
    %38 = arith.cmpi slt, %36, %37 : vector<16x128xi32>
    %cst_13 = arith.constant 0.000000e+00 : f32
    %39 = vector.broadcast %cst_13 : f32 to vector<16x128xf32>
    %40 = arith.select %38, %30, %39 : vector<16x128xi1>, vector<16x128xf32>
    %c0_14 = arith.constant 0 : index
    %c0_15 = arith.constant 0 : index
    %c0_16 = arith.constant 0 : index
    %41 = vector.load %arg4[%c0_14, %c0_15, %c0_16] : memref<1x8x128xf32, #tpu.memory_space<vmem>>, vector<1x8x128xf32>
    %42 = vector.shape_cast %40 : vector<16x128xf32> to vector<2x8x128xf32>
    %cst_17 = arith.constant dense<0.000000e+00> : vector<8x128xf32>
    %43 = vector.multi_reduction <add>, %42, %cst_17 [0] : vector<2x8x128xf32> to vector<8x128xf32>
    %44 = vector.shape_cast %43 : vector<8x128xf32> to vector<1x8x128xf32>
    %45 = arith.addf %41, %44 : vector<1x8x128xf32>
    %c0_18 = arith.constant 0 : index
    %c0_19 = arith.constant 0 : index
    %c0_20 = arith.constant 0 : index
    %46 = vector.load %arg4[%c0_18, %c0_19, %c0_20] : memref<1x8x128xf32, #tpu.memory_space<vmem>>, vector<1x8x128xf32>
    tpu.vector_store %arg4[%c0_18, %c0_19, %c0_20], %45 {strides = array<i32>} : memref<1x8x128xf32, #tpu.memory_space<vmem>>, vector<1x8x128xf32>,
    return
  }
  func.func @transform_0(%arg0: i32, %arg1: i32) -> (i32, i32) {
    %c1_i32 = arith.constant 1 : i32
    %0 = arith.muli %arg0, %c1_i32 : i32
    %1 = arith.addi %0, %arg1 : i32
    %c0_i32 = arith.constant 0 : i32
    %2 = arith.minsi %1, %c0_i32 : i32
    %c0_i32_0 = arith.constant 0 : i32
    %c0_i32_1 = arith.constant 0 : i32
    return %2, %c0_i32_0 : i32, i32
  }
  func.func @transform_1(%arg0: i32, %arg1: i32) -> (i32, i32) {
    %c1_i32 = arith.constant 1 : i32
    %0 = arith.muli %arg0, %c1_i32 : i32
    %1 = arith.addi %0, %arg1 : i32
    %c0_i32 = arith.constant 0 : i32
    %2 = arith.minsi %1, %c0_i32 : i32
    %c0_i32_0 = arith.constant 0 : i32
    %c0_i32_1 = arith.constant 0 : i32
    return %2, %c0_i32_0 : i32, i32
  }
  func.func @transform_2(%arg0: i32, %arg1: i32) -> (i32, i32, i32) {
    %c0_i32 = arith.constant 0 : i32
    %c0_i32_0 = arith.constant 0 : i32
    %c0_i32_1 = arith.constant 0 : i32
    return %arg0, %c0_i32, %c0_i32_0 : i32, i32, i32
  }
}

</mosaic_0001>

<llo_original>
// kernel: tpu_custom_call.1
$region0: #{tpu_custom_call.1}
  #allocation0 [shape = 'u32[]', space=smem, size = 0x4, offset = 0x4, fixed_abs, tag = 'smem constant byte address 0x4 - core index']
  #allocation1 [shape = 'u32[144,128]{1,0:T(1,128)}', space=vmem, size = 0x12000, scoped, tag = 'internal scratch']
  %s0 = inlined_call_operand.hbm [shape: f32[16,128], index: 0, kind: input, shape index: {}]
  %s1 = inlined_call_operand.hbm [shape: f32[16,128], index: 1, kind: input, shape index: {}]
  %s2 = inlined_call_operand.hbm [shape: f32[1,8,128], index: 2, kind: output, shape index: {}]
  %s3 = sld [smem:[#allocation0]]
  $region30: #{tpu_custom_call.1} parent=0
    _
  %s5 = ssub.s32 1, %s3
  %s6 = scalar_select 0, %s5, %s3
  $region1: #{tpu_custom_call.1} parent=0
    #allocation2 [shape = 'u8[8192]{0}', space=vmem, size = 0x2000, scoped, tag = 'input window, operand 0, single buffered']
    #allocation3 [shape = 's32[1]{0}', space=sflag, size = 0x4, scoped, tag = 'scoped memory for tpu_custom_call.1']
    #allocation4 [shape = 's32[1]{0}', space=sflag, size = 0x4, scoped, tag = 'scoped memory for tpu_custom_call.1']
    #allocation5 [shape = 'u8[8192]{0}', space=vmem, size = 0x2000, scoped, tag = 'input window, operand 1, single buffered']
    #allocation6 [shape = 's32[1]{0}', space=sflag, size = 0x4, scoped, tag = 'scoped memory for tpu_custom_call.1']
    #allocation7 [shape = 'u8[4096]{0}', space=vmem, size = 0x1000, scoped, tag = 'output window, operand 0, single buffered']
    %7 = vsyncpa [#allocation3], 0
    %8 = vsyncpa [#allocation6], 0
    %9 = vsyncpa [#allocation4], 0
    // Predicated region
    $region2: #{tpu_custom_call.1} parent=1 // pred_check
      _
    $region3: #{tpu_custom_call.1} parent=1 // pred_check_branch
      %11 = sbr.rel (0) target = $region5
    $region4: #{tpu_custom_call.1} parent=1 // pred_region
      %s12 = sadd.s32 0, 0
      %p13 = scmp.lt.s32.totalorder %s12, 0
      %s14 = scalar_select %p13, %s12, 0
      %s15 = smul.u32 2, %s14
      %s17 = ssub.s32 256, 256
      %18 = vsyncadd [#allocation3], %s17
      %s19 = smul.addr %s15, 128
      %s20 = scalar_lea.hbm %s0, %s19
      %s21 = sshll.u32 [#allocation2], 4
      %s22 = int_to_ptr.vmem [resolvable:$true] %s21
      %27 = dma.hbm_to_vmem [thread:$0]  %s20, 256, %s22, [#allocation3], 128, 128, 8
    $region5: #{tpu_custom_call.1} parent=1 // pred_fallthru
      _
    // Predicated region
    $region6: #{tpu_custom_call.1} parent=1 // pred_check
      _
    $region7: #{tpu_custom_call.1} parent=1 // pred_check_branch
      %29 = sbr.rel (0) target = $region9
    $region8: #{tpu_custom_call.1} parent=1 // pred_region
      %s30 = sadd.s32 0, 0
      %p31 = scmp.lt.s32.totalorder %s30, 0
      %s32 = scalar_select %p31, %s30, 0
      %s33 = smul.u32 2, %s32
      %s35 = ssub.s32 256, 256
      %36 = vsyncadd [#allocation6], %s35
      %s37 = smul.addr %s33, 128
      %s38 = scalar_lea.hbm %s1, %s37
      %s39 = sshll.u32 [#allocation5], 4
      %s40 = int_to_ptr.vmem [resolvable:$true] %s39
      %45 = dma.hbm_to_vmem [thread:$0]  %s38, 256, %s40, [#allocation6], 128, 128, 8
    $region9: #{tpu_custom_call.1} parent=1 // pred_fallthru
      _
    // Predicated region
    $region10: #{tpu_custom_call.1} parent=1 // pred_check
      _
    $region11: #{tpu_custom_call.1} parent=1 // pred_check_branch
      %47 = sbr.rel (0) target = $region13
    $region12: #{tpu_custom_call.1} parent=1 // pred_region
      %48 = dma.done [#allocation3], 256
    $region13: #{tpu_custom_call.1} parent=1 // pred_fallthru
      _
    // Predicated region
    $region14: #{tpu_custom_call.1} parent=1 // pred_check
      _
    $region15: #{tpu_custom_call.1} parent=1 // pred_check_branch
      %50 = sbr.rel (0) target = $region17
    $region16: #{tpu_custom_call.1} parent=1 // pred_region
      %51 = dma.done [#allocation6], 256
    $region17: #{tpu_custom_call.1} parent=1 // pred_fallthru
      _
    %s52 = sadd.s32 0, 0
    %p53 = scmp.lt.s32.totalorder %s52, 0
    %s54 = scalar_select %p53, %s52, 0
    %s55 = smul.u32 2, %s54
    %s56 = sadd.s32 0, 0
    %p57 = scmp.lt.s32.totalorder %s56, 0
    %s58 = scalar_select %p57, %s56, 0
    %s59 = smul.u32 2, %s58
    %p60 = scmp.eq.s32.totalorder 0, 0
    // Predicated region
    $region18: #{tpu_custom_call.1} parent=1 // pred_check
      %p61 = pneg %p60
    $region19: #{tpu_custom_call.1} parent=1 // pred_check_branch
      %63 = sbr.rel (%p61) target = $region21
    $region20: #{tpu_custom_call.1} parent=1 // pred_region
      %64 = vst [vmem:[#allocation7] sm:$0xff] 0.0
    $region21: #{tpu_custom_call.1} parent=1 // pred_fallthru
      _
    %v65 = vld [vmem:[#allocation2] sm:$0xff]
    %v66 = vld [vmem:[#allocation2 + $0x8] sm:$0xff]
    %v67 = vld [vmem:[#allocation5] sm:$0xff]
    %v68 = vld [vmem:[#allocation5 + $0x8] sm:$0xff]
    %v69 = vand.u32 2147483647, %v65
    %v70 = vand.u32 2147483647, %v66
    %v71 = vsub.f32 0.0, %v69
    %v72 = vsub.f32 0.0, %v70
    %v73 = vmul.f32 %v71, 1.442695
    %v74 = vpow.pop %v73
    %v75 = vmul.f32 %v72, 1.442695
    %v76 = vpow.pop %v75
    %v77 = vadd.f32 %v74, 1.0
    %v78 = vlog2.pop %v77
    %v79 = vmul.f32 %v78, 0.6931472
    %v80 = vmul.f32 -0.5, %v74
    %v81 = vadd.f32 %v80, 1.0
    %v82 = vmul.f32 %v81, %v74
    %v83 = vand.u32 2147483647, %v74
    %vm84 = vcmp.lt.f32.partialorder %v83, 0.0004427343
    %v85 = vsel %vm84, %v82, %v79
    %v86 = vadd.f32 %v76, 1.0
    %v87 = vlog2.pop %v86
    %v88 = vmul.f32 %v87, 0.6931472
    %v89 = vmul.f32 -0.5, %v76
    %v90 = vadd.f32 %v89, 1.0
    %v91 = vmul.f32 %v90, %v76
    %v92 = vand.u32 2147483647, %v76
    %vm93 = vcmp.lt.f32.partialorder %v92, 0.0004427343
    %v94 = vsel %vm93, %v91, %v88
    %v95 = vsub.f32 0.0, %v65
    %v96 = vsub.f32 0.0, %v66
    %v97 = vmax.f32 %v95, 0.0
    %v98 = vmax.f32 %v96, 0.0
    %v99 = vadd.f32 %v97, %v85
    %v100 = vadd.f32 %v98, %v94
    %v101 = vsub.f32 0.0, %v99
    %v102 = vsub.f32 0.0, %v100
    %v103 = vmax.f32 %v65, 0.0
    %v104 = vmax.f32 %v66, 0.0
    %v105 = vadd.f32 %v103, %v85
    %v106 = vadd.f32 %v104, %v94
    %v107 = vsub.f32 0.0, %v105
    %v108 = vsub.f32 0.0, %v106
    %v109 = vmul.f32 %v67, 0.010503335
    %v110 = vmul.f32 %v68, 0.010503335
    %v111 = vmul.f32 %v109, %v101
    %v112 = vmul.f32 %v110, %v102
    %v113 = vsub.f32 1.0, %v67
    %v114 = vsub.f32 1.0, %v68
    %v115 = vmul.f32 %v113, 0.033819165
    %v116 = vmul.f32 %v114, 0.033819165
    %v117 = vmul.f32 %v115, %v107
    %v118 = vmul.f32 %v116, %v108
    %v119 = vadd.f32 %v111, %v117
    %v120 = vadd.f32 %v112, %v118
    %s121 = sadd.s32 0, 0
    %s122 = smul.u32 %s121, 16
    %v123 = vlaneseq
    %v124 = vshrl.u32 %v123, 7
    %v125 = vadd.s32 %v124, 8
    %v126 = vstv %s122
    %v127 = vadd.s32 %v126, %v124
    %v128 = vadd.s32 %v126, %v125
    %vm129 = vcmp.lt.s32.totalorder %v127, 16
    %vm130 = vcmp.lt.s32.totalorder %v128, 16
    %v131 = vsel %vm129, %v119, 0.0
    %v132 = vsel %vm130, %v120, 0.0
    %v133 = vld [vmem:[#allocation7] sm:$0xff]
    %v134 = vadd.f32 %v131, %v132
    %v135 = vadd.f32 %v133, %v134
    %136 = vst [vmem:[#allocation7] sm:$0xff] %v135
    // Predicated region
    $region22: #{tpu_custom_call.1} parent=1 // pred_check
      _
    $region23: #{tpu_custom_call.1} parent=1 // pred_check_branch
      %138 = sbr.rel (0) target = $region25
    $region24: #{tpu_custom_call.1} parent=1 // pred_region
      %s140 = ssub.s32 128, 128
      %141 = vsyncadd [#allocation4], %s140
      %s143 = sshll.u32 [#allocation7], 4
      %s144 = int_to_ptr.vmem [resolvable:$true] %s143
      %146 = dma.vmem_to_hbm [thread:$0]  %s144, 128, %s2, [#allocation4]
    $region25: #{tpu_custom_call.1} parent=1 // pred_fallthru
      _
    // Predicated region
    $region26: #{tpu_custom_call.1} parent=1 // pred_check
      _
    $region27: #{tpu_custom_call.1} parent=1 // pred_check_branch
      %148 = sbr.rel (0) target = $region29
    $region28: #{tpu_custom_call.1} parent=1 // pred_region
      %149 = dma.done [#allocation4], 128
    $region29: #{tpu_custom_call.1} parent=1 // pred_fallthru
      _
    %150 = vsyncpa [#allocation3], 1
    %151 = vsyncpa [#allocation6], 1
    %152 = vsyncpa [#allocation4], 1

</llo_original>
